<compile_context>
chip_gen: v5e
topology: v5e:2x2
jax: 0.10.0
libtpu: 0.0.40
codegen_flags: <defaults>
</compile_context>

<pallas_src>
import math

import jax
import jax.numpy as jnp
from jax.experimental import pallas as pl
from jax.experimental.pallas import tpu as pltpu

LN_EPS = 1e-5
_LANE = 128
_TOKENS_PER_BLOCK = 4096


def _round_up(x, m):
    return ((x + m - 1) // m) * m


def _sublane(itemsize):
    return {4: 8, 2: 16, 1: 32}.get(int(itemsize), 8)


def _vmem_capacity_bytes():
    try:
        cap = getattr(pltpu.get_tpu_info(), "vmem_capacity_bytes", None)
        if cap:
            return int(cap)
    except Exception:
        pass
    return 64 * 2 ** 20  # conservative default (v7x per-TensorCore VMEM)


def _pm_kernel(x_ref, wa_ref, wb_ref, b_ref, o_ref):
    # x_ref : (TH, 2, W2, 2C)  TH row-pairs of the padded image, channel-last
    # wa_ref: (2C, OD)  gamma-folded projection rows for the even-H half [x0|x2]
    # wb_ref: (2C, OD)  gamma-folded projection rows for the odd-H  half [x1|x3]
    # b_ref : (1, OD)   beta @ W   (float32)
    # o_ref : (TH*W2, OD)
    th, _, w2, c2 = x_ref.shape
    m = th * w2
    xa = x_ref[:, 0].reshape(m, c2).astype(jnp.float32)      # [x0|x2]
    xb = x_ref[:, 1].reshape(m, c2).astype(jnp.float32)      # [x1|x3]

    # Single-pass LayerNorm statistics over the merged 4C channels.
    inv_n = 1.0 / float(2 * c2)
    mu = (jnp.sum(xa, -1, keepdims=True) + jnp.sum(xb, -1, keepdims=True)) * inv_n
    ex2 = (jnp.sum(xa * xa, -1, keepdims=True)
           + jnp.sum(xb * xb, -1, keepdims=True)) * inv_n
    var = jnp.maximum(ex2 - mu * mu, 0.0)
    rstd = jax.lax.rsqrt(var + LN_EPS)

    ya = ((xa - mu) * rstd).astype(wa_ref.dtype)
    yb = ((xb - mu) * rstd).astype(wb_ref.dtype)

    acc = jnp.dot(ya, wa_ref[...], preferred_element_type=jnp.float32)
    acc = acc + jnp.dot(yb, wb_ref[...], preferred_element_type=jnp.float32)
    o_ref[...] = (acc + b_ref[...]).astype(o_ref.dtype)


def patch_merging_2d(x, gamma, beta, w_red, *, prefer_bf16_matmul=False):
    """PatchMerging2D forward, channel-last.

    x:      (B, H, W, C)
    gamma:  (4C,)  LayerNorm weight
    beta:   (4C,)  LayerNorm bias
    w_red:  (4C, out_dim) == nn.Linear(4C, out_dim, bias=False).weight.T
    prefer_bf16_matmul: cast the projection + normalized activations to bf16
        for the MXU even when weights are f32 (frees MXU headroom on v6e/v7x).
    Returns (B, ceil(H/2), ceil(W/2), out_dim).
    """
    B, H, W, C = x.shape
    four_c = 4 * C
    out_dim = w_red.shape[1]
    assert w_red.shape[0] == four_c
    assert gamma.shape == (four_c,) and beta.shape == (four_c,)

    # Pad H/W to even on the high side with zeros (matches torch F.pad).
    # TODO(synk): fold the single remainder row/column into the kernel (masked
    # contribution) to avoid this extra HBM pass when H or W is odd.
    if (H % 2) or (W % 2):
        x = jnp.pad(x, ((0, 0), (0, H % 2), (0, W % 2), (0, 0)))
    Hp, Wp = x.shape[1], x.shape[2]
    H2, W2 = Hp // 2, Wp // 2
    R = B * H2
    c2 = 2 * C

    # Free row-major view: (b, 2*h2+p, 2*j+q, c) -> (b*H2+h2, p, j, q*C+c).
    x4 = x.reshape(R, 2, W2, c2)

    # Fold the LN affine into the projection and split it into the two halves
    # the kernel consumes in memory-natural order.
    w32 = w_red.astype(jnp.float32)
    wg = gamma.astype(jnp.float32)[:, None] * w32
    w_dtype = jnp.bfloat16 if prefer_bf16_matmul else w_red.dtype
    wa = jnp.concatenate([wg[0:C], wg[2 * C:3 * C]], axis=0).astype(w_dtype)   # [x0|x2]
    wb = jnp.concatenate([wg[C:2 * C], wg[3 * C:]], axis=0).astype(w_dtype)    # [x1|x3]
    bias = (beta.astype(jnp.float32) @ w32).reshape(1, out_dim)

    # ---------------- generation-aware block sizing ----------------
    isz = jnp.dtype(x.dtype).itemsize
    sub = _sublane(isz)
    w_isz = jnp.dtype(w_dtype).itemsize
    sub_w = _sublane(w_isz)

    # VMEM-padded bytes per row-pair (input + output blocks, double-buffered)
    # plus an estimate of the in-kernel f32 temporaries.
    in_per_th = 2 * _round_up(W2, sub) * _round_up(c2, _LANE) * isz
    out_per_th = W2 * _round_up(out_dim, _LANE) * isz
    tmp_per_th = W2 * (4 * _round_up(c2, _LANE) + _round_up(out_dim, _LANE)) * 4
    per_th = 2 * (in_per_th + out_per_th) + tmp_per_th

    # Grid-invariant operands (still double-buffered by the pipeline).
    const_bytes = 2 * (2 * _round_up(c2, sub_w) * _round_up(out_dim, _LANE) * w_isz
                       + _round_up(out_dim, _LANE) * 4)

    vmem_cap = _vmem_capacity_bytes()                       # 64MiB v7x, 128MiB v5e/v6e
    hard_cap = max(32 * 2 ** 20, min(vmem_cap - 16 * 2 ** 20, 100 * 2 ** 20))
    block_budget = min(vmem_cap // 4, 32 * 2 ** 20,
                       max(2 * 2 ** 20, (hard_cap - const_bytes) // 2))

    th = max(1, min(R,
                    block_budget // per_th,
                    max(1, _TOKENS_PER_BLOCK // max(W2, 1)),
                    max(1, R // 4)))   # >=4 grid steps -> 2 per TensorCore on v7x
    # Output block (th*W2, out_dim): second-to-last dim must be a multiple of the
    # sublane tile unless the block spans all rows.
    if th < R:
        th = min(R, _round_up(th, sub // math.gcd(W2, sub)))

    need = th * per_th + const_bytes
    vmem_limit = min(max(32 * 2 ** 20, need + need // 2 + 2 * 2 ** 20), hard_cap)
    vmem_limit = max(vmem_limit, min(need + 2 * 2 ** 20,
                                     max(vmem_cap - 4 * 2 ** 20, 32 * 2 ** 20)))

    grid = (pl.cdiv(R, th),)
    out = pl.pallas_call(
        _pm_kernel,
        out_shape=jax.ShapeDtypeStruct((R * W2, out_dim), x.dtype),
        grid_spec=pltpu.PrefetchScalarGridSpec(
            num_scalar_prefetch=0,
            grid=grid,
            in_specs=[
                pl.BlockSpec((th, 2, W2, c2), lambda i: (i, 0, 0, 0)),
                pl.BlockSpec((c2, out_dim), lambda i: (0, 0)),
                pl.BlockSpec((c2, out_dim), lambda i: (0, 0)),
                pl.BlockSpec((1, out_dim), lambda i: (0, 0)),
            ],
            out_specs=pl.BlockSpec((th * W2, out_dim), lambda i: (i, 0)),
        ),
        compiler_params=pltpu.CompilerParams(
            dimension_semantics=("parallel",),
            vmem_limit_bytes=int(vmem_limit),
        ),
    )(x4, wa, wb, bias)

    return out.reshape(B, H2, W2, out_dim)


def _reference(x, gamma, beta, w_red):
    B, H, W, C = x.shape
    if (H % 2) or (W % 2):
        x = jnp.pad(x, ((0, 0), (0, H % 2), (0, W % 2), (0, 0)))
    x0 = x[:, 0::2, 0::2, :]
    x1 = x[:, 1::2, 0::2, :]
    x2 = x[:, 0::2, 1::2, :]
    x3 = x[:, 1::2, 1::2, :]
    xm = jnp.concatenate([x0, x1, x2, x3], axis=-1).astype(jnp.float32)
    mu = jnp.mean(xm, axis=-1, keepdims=True)
    var = jnp.mean((xm - mu) ** 2, axis=-1, keepdims=True)
    xn = (xm - mu) * jax.lax.rsqrt(var + LN_EPS)
    y = xn * gamma.astype(jnp.float32) + beta.astype(jnp.float32)
    return jnp.dot(y, w_red.astype(jnp.float32),
                   precision=jax.lax.Precision.HIGHEST)


if __name__ == "__main__":
    key = jax.random.PRNGKey(0)
    k_x, k_g, k_b, k_w, k_x2, k_g2, k_b2, k_w2 = jax.random.split(key, 8)

    # --- Test 1: even spatial dims (PatchMerging2D(dim=16), out_dim = 2*dim) ---
    B, H, W, dim = 2, 16, 16, 16
    four_c, out_dim = 4 * dim, 2 * dim
    x = jax.random.normal(k_x, (B, H, W, dim), dtype=jnp.float32)
    gamma = 1.0 + 0.1 * jax.random.normal(k_g, (four_c,), dtype=jnp.float32)
    beta = 0.1 * jax.random.normal(k_b, (four_c,), dtype=jnp.float32)
    # nn.Linear weight is (out, in); the kernel consumes its transpose (in, out).
    w_red = (jax.random.normal(k_w, (out_dim, four_c), dtype=jnp.float32)
             / jnp.sqrt(four_c)).T

    out = jax.block_until_ready(patch_merging_2d(x, gamma, beta, w_red))
    ref = _reference(x, gamma, beta, w_red)
    assert out.shape == (B, H // 2, W // 2, out_dim), out.shape
    err = float(jnp.max(jnp.abs(out - ref)))
    assert err < 1e-3, err

    # --- Test 2: odd spatial dims (F.pad path) + ragged grid (H=13, W=15) ---
    B2, Ho, Wo, dim2 = 2, 13, 15, 8
    x_odd = jax.random.normal(k_x2, (B2, Ho, Wo, dim2), dtype=jnp.float32)
    g2 = 1.0 + 0.1 * jax.random.normal(k_g2, (4 * dim2,), dtype=jnp.float32)
    b2 = 0.1 * jax.random.normal(k_b2, (4 * dim2,), dtype=jnp.float32)
    w2 = (jax.random.normal(k_w2, (2 * dim2, 4 * dim2), dtype=jnp.float32)
          / jnp.sqrt(4 * dim2)).T
    out2 = jax.block_until_ready(patch_merging_2d(x_odd, g2, b2, w2))
    ref2 = _reference(x_odd, g2, b2, w2)
    assert out2.shape == (B2, (Ho + 1) // 2, (Wo + 1) // 2, 2 * dim2), out2.shape
    err2 = float(jnp.max(jnp.abs(out2 - ref2)))
    assert err2 < 1e-3, err2

    print("KERNEL_OK")
</pallas_src>

<mosaic_0001>
module attributes {stable_mosaic.version = 11 : i64} {
  func.func @_pm_kernel(%arg0: i32, %arg1: memref<4x2x8x32xf32, #tpu.memory_space<vmem>>, %arg2: memref<32x32xf32, #tpu.memory_space<vmem>>, %arg3: memref<32x32xf32, #tpu.memory_space<vmem>>, %arg4: memref<1x32xf32, #tpu.memory_space<vmem>>, %arg5: memref<32x32xf32, #tpu.memory_space<vmem>>) attributes {dimension_semantics = [#tpu.dimension_semantics<parallel>], iteration_bounds = array<i64: 4>, scalar_prefetch = 0 : i64, scratch_operands = 0 : i64, tpu.core_type = #tpu.core_type<tc>, window_params = [{transform_indices = @transform_0, window_bounds = array<i64: 4, 2, 8, 32>}, {pipeline_mode = #tpu.pipeline_mode<synchronous>, transform_indices = @transform_1, window_bounds = array<i64: 32, 32>}, {pipeline_mode = #tpu.pipeline_mode<synchronous>, transform_indices = @transform_2, window_bounds = array<i64: 32, 32>}, {pipeline_mode = #tpu.pipeline_mode<synchronous>, transform_indices = @transform_3, window_bounds = array<i64: 1, 32>}, {transform_indices = @transform_4, window_bounds = array<i64: 32, 32>}]} {
    %c0 = arith.constant 0 : index
    %c0_0 = arith.constant 0 : index
    %c0_1 = arith.constant 0 : index
    %c0_2 = arith.constant 0 : index
    %0 = vector.load %arg1[%c0, %c0_0, %c0_1, %c0_2] : memref<4x2x8x32xf32, #tpu.memory_space<vmem>>, vector<4x1x8x32xf32>
    %1 = vector.shape_cast %0 : vector<4x1x8x32xf32> to vector<4x8x32xf32>
    %2 = vector.shape_cast %1 : vector<4x8x32xf32> to vector<32x32xf32>
    %c0_3 = arith.constant 0 : index
    %c1 = arith.constant 1 : index
    %c0_4 = arith.constant 0 : index
    %c0_5 = arith.constant 0 : index
    %3 = vector.load %arg1[%c0_3, %c1, %c0_4, %c0_5] : memref<4x2x8x32xf32, #tpu.memory_space<vmem>>, vector<4x1x8x32xf32>
    %4 = vector.shape_cast %3 : vector<4x1x8x32xf32> to vector<4x8x32xf32>
    %5 = vector.shape_cast %4 : vector<4x8x32xf32> to vector<32x32xf32>
    %cst = arith.constant dense<0.000000e+00> : vector<32xf32>
    %6 = vector.multi_reduction <add>, %2, %cst [1] : vector<32x32xf32> to vector<32xf32>
    %7 = vector.shape_cast %6 : vector<32xf32> to vector<32x1xf32>
    %cst_6 = arith.constant dense<0.000000e+00> : vector<32xf32>
    %8 = vector.multi_reduction <add>, %5, %cst_6 [1] : vector<32x32xf32> to vector<32xf32>
    %9 = vector.shape_cast %8 : vector<32xf32> to vector<32x1xf32>
    %10 = arith.addf %7, %9 : vector<32x1xf32>
    %cst_7 = arith.constant 1.562500e-02 : f32
    %11 = vector.broadcast %cst_7 : f32 to vector<32x1xf32>
    %12 = arith.mulf %10, %11 : vector<32x1xf32>
    %13 = arith.mulf %2, %2 : vector<32x32xf32>
    %cst_8 = arith.constant dense<0.000000e+00> : vector<32xf32>
    %14 = vector.multi_reduction <add>, %13, %cst_8 [1] : vector<32x32xf32> to vector<32xf32>
    %15 = vector.shape_cast %14 : vector<32xf32> to vector<32x1xf32>
    %16 = arith.mulf %5, %5 : vector<32x32xf32>
    %cst_9 = arith.constant dense<0.000000e+00> : vector<32xf32>
    %17 = vector.multi_reduction <add>, %16, %cst_9 [1] : vector<32x32xf32> to vector<32xf32>
    %18 = vector.shape_cast %17 : vector<32xf32> to vector<32x1xf32>
    %19 = arith.addf %15, %18 : vector<32x1xf32>
    %cst_10 = arith.constant 1.562500e-02 : f32
    %20 = vector.broadcast %cst_10 : f32 to vector<32x1xf32>
    %21 = arith.mulf %19, %20 : vector<32x1xf32>
    %22 = arith.mulf %12, %12 : vector<32x1xf32>
    %23 = arith.subf %21, %22 : vector<32x1xf32>
    %cst_11 = arith.constant 0.000000e+00 : f32
    %24 = vector.broadcast %cst_11 : f32 to vector<32x1xf32>
    %25 = arith.maximumf %23, %24 : vector<32x1xf32>
    %cst_12 = arith.constant 9.99999974E-6 : f32
    %26 = vector.broadcast %cst_12 : f32 to vector<32x1xf32>
    %27 = arith.addf %25, %26 : vector<32x1xf32>
    %28 = math.rsqrt %27 : vector<32x1xf32>
    %29 = vector.broadcast %12 : vector<32x1xf32> to vector<32x32xf32>
    %30 = arith.subf %2, %29 : vector<32x32xf32>
    %31 = vector.broadcast %28 : vector<32x1xf32> to vector<32x32xf32>
    %32 = arith.mulf %30, %31 : vector<32x32xf32>
    %33 = vector.broadcast %12 : vector<32x1xf32> to vector<32x32xf32>
    %34 = arith.subf %5, %33 : vector<32x32xf32>
    %35 = vector.broadcast %28 : vector<32x1xf32> to vector<32x32xf32>
    %36 = arith.mulf %34, %35 : vector<32x32xf32>
    %c0_13 = arith.constant 0 : index
    %c0_14 = arith.constant 0 : index
    %37 = vector.load %arg2[%c0_13, %c0_14] : memref<32x32xf32, #tpu.memory_space<vmem>>, vector<32x32xf32>
    %cst_15 = arith.constant dense<0.000000e+00> : vector<32x32xf32>
    %38 = tpu.matmul %32, %37, %cst_15 {dimension_numbers = #tpu.dot_dimension_numbers<[1], [0], [0], [1], [0, 0, 1, 1], [], []>} : vector<32x32xf32>, vector<32x32xf32>, vector<32x32xf32> -> vector<32x32xf32>
    %c0_16 = arith.constant 0 : index
    %c0_17 = arith.constant 0 : index
    %39 = vector.load %arg3[%c0_16, %c0_17] : memref<32x32xf32, #tpu.memory_space<vmem>>, vector<32x32xf32>
    %cst_18 = arith.constant dense<0.000000e+00> : vector<32x32xf32>
    %40 = tpu.matmul %36, %39, %cst_18 {dimension_numbers = #tpu.dot_dimension_numbers<[1], [0], [0], [1], [0, 0, 1, 1], [], []>} : vector<32x32xf32>, vector<32x32xf32>, vector<32x32xf32> -> vector<32x32xf32>
    %41 = arith.addf %38, %40 : vector<32x32xf32>
    %c0_19 = arith.constant 0 : index
    %c0_20 = arith.constant 0 : index
    %42 = vector.load %arg4[%c0_19, %c0_20] : memref<1x32xf32, #tpu.memory_space<vmem>>, vector<1x32xf32>
    %43 = vector.broadcast %42 : vector<1x32xf32> to vector<32x32xf32>
    %44 = arith.addf %41, %43 : vector<32x32xf32>
    %c0_21 = arith.constant 0 : index
    %c0_22 = arith.constant 0 : index
    %45 = vector.load %arg5[%c0_21, %c0_22] : memref<32x32xf32, #tpu.memory_space<vmem>>, vector<32x32xf32>
    tpu.vector_store %arg5[%c0_21, %c0_22], %44 {strides = array<i32>} : memref<32x32xf32, #tpu.memory_space<vmem>>, vector<32x32xf32>,
    return
  }
  func.func @transform_0(%arg0: i32) -> (i32, i32, i32, i32) {
    %c0_i32 = arith.constant 0 : i32
    %c0_i32_0 = arith.constant 0 : i32
    %c0_i32_1 = arith.constant 0 : i32
    %c0_i32_2 = arith.constant 0 : i32
    return %arg0, %c0_i32, %c0_i32_0, %c0_i32_1 : i32, i32, i32, i32
  }
  func.func @transform_1(%arg0: i32) -> (i32, i32) {
    %c0_i32 = arith.constant 0 : i32
    %c0_i32_0 = arith.constant 0 : i32
    %c0_i32_1 = arith.constant 0 : i32
    return %c0_i32, %c0_i32_0 : i32, i32
  }
  func.func @transform_2(%arg0: i32) -> (i32, i32) {
    %c0_i32 = arith.constant 0 : i32
    %c0_i32_0 = arith.constant 0 : i32
    %c0_i32_1 = arith.constant 0 : i32
    return %c0_i32, %c0_i32_0 : i32, i32
  }
  func.func @transform_3(%arg0: i32) -> (i32, i32) {
    %c0_i32 = arith.constant 0 : i32
    %c0_i32_0 = arith.constant 0 : i32
    %c0_i32_1 = arith.constant 0 : i32
    return %c0_i32, %c0_i32_0 : i32, i32
  }
  func.func @transform_4(%arg0: i32) -> (i32, i32) {
    %c0_i32 = arith.constant 0 : i32
    %c0_i32_0 = arith.constant 0 : i32
    return %arg0, %c0_i32 : i32, i32
  }
}

</mosaic_0001>

<llo_original>
// kernel: tpu_custom_call.1
$region0: #{tpu_custom_call.1}
  #allocation0 [shape = 'u32[]', space=smem, size = 0x4, offset = 0x4, fixed_abs, tag = 'smem constant byte address 0x4 - core index']
  #allocation1 [shape = 'u32[72,128]{1,0:T(1,128)}', space=vmem, size = 0x9000, scoped, tag = 'internal scratch']
  %s0 = inlined_call_operand.hbm [shape: f32[16,2,8,32], index: 0, kind: input, shape index: {}]
  %s1 = inlined_call_operand.hbm [shape: f32[32,32], index: 1, kind: input, shape index: {}]
  %s2 = inlined_call_operand.hbm [shape: f32[32,32], index: 2, kind: input, shape index: {}]
  %s3 = inlined_call_operand.vmem [shape: f32[1,32], index: 3, kind: input, shape index: {}]
  %s4 = inlined_call_operand.vmem [shape: f32[128,32], index: 4, kind: output, shape index: {}]
  %s5 = sld [smem:[#allocation0]]
  $region61: #{tpu_custom_call.1} parent=0
    _
  %s7 = ssub.s32 1, %s5
  %s8 = scalar_select 0, %s7, %s5
  $region1: #{tpu_custom_call.1} parent=0
    #allocation2 [shape = 'u8[65536]{0}', space=vmem, size = 0x10000, scoped, tag = 'input window, operand 0']
    #allocation3 [shape = 's32[2]{0}', space=sflag, size = 0x8, scoped, tag = 'scoped memory for tpu_custom_call.1']
    #allocation4 [shape = 'u8[16384]{0}', space=vmem, size = 0x4000, scoped, tag = 'input window, operand 1, single buffered']
    #allocation5 [shape = 's32[1]{0}', space=sflag, size = 0x4, scoped, tag = 'scoped memory for tpu_custom_call.1']
    #allocation6 [shape = 'u8[16384]{0}', space=vmem, size = 0x4000, scoped, tag = 'input window, operand 2, single buffered']
    %9 = vsyncpa [#allocation3], 0
    %s10 = scalar_lea.sflag [#allocation3], 1
    %11 = vsyncpa %s10, 0
    %12 = vsyncpa [#allocation5], 0
    loop: start=0, step=1, limit=6
    $region2: #{tpu_custom_call.1} parent=1 // loop_pre_header
      _
    $region3: #{tpu_custom_call.1} parent=1 // loop_header
      %s14 = sphi 0, %s18
      %p15 = scmp.ge.s32.totalorder %s14, 6
      %s24 = sphi 0, %s26
      %s27 = sphi 0, %s24
      %s28 = sphi 0, %s27
      %s44 = sphi 0, %s28
      %s48 = sphi 0, %s48
      %s50 = sphi 0, %s48
      %s51 = sphi 0, %s50
      %s65 = sphi 0, %s51
      %s69 = sphi 0, %s69
      %s71 = sphi 0, %s69
      %s72 = sphi 0, %s71
      %s86 = sphi 0, %s72
      %s90 = sphi 0, %s90
      %s92 = sphi 0, %s90
      %s93 = sphi 0, %s92
      %s107 = sphi 0, %s93
      %s113 = sphi 0, %s115
      %s116 = sphi 0, %s113
      %s117 = sphi 0, %s116
      %s133 = sphi 0, %s117
    $region4: #{tpu_custom_call.1} parent=1 // loop_header_branch
      %17 = sbr.rel (%p15) target = $region8
    $region5: #{tpu_custom_call.1} parent=1 // loop_body
      %s19 = ssub.s32 %s14, 1
      %s20 = ssub.s32 %s14, 2
      %s21 = sadd.s32 %s14, 1
      %s22 = ssub.s32 %s14, %s21
      %p23 = scmp.eq.s32.totalorder %s22, 0
      %s25 = sadd.s32 %s24, 1
      %s26 = scalar_select %p23, %s24, %s25
      %p29 = pneg %p23
      %p30 = scmp.eq.s32.totalorder %s14, 3
      %p31 = por %p29, %p30
      %p32 = scmp.ne.s32.totalorder %s24, %s27
      %p33 = scmp.eq.s32.totalorder %s14, 0
      %p34 = por %p32, %p33
      %p35 = scmp.ne.s32.totalorder %s24, %s27
      %p36 = scmp.eq.s32.totalorder %s19, 3
      %p37 = por %p35, %p36
      %p38 = scmp.ne.s32.totalorder %s27, %s28
      %p39 = scmp.eq.s32.totalorder %s19, 0
      %p40 = por %p38, %p39
      %p41 = scmp.ne.s32.totalorder %s27, %s28
      %p42 = scmp.eq.s32.totalorder %s20, 3
      %p43 = por %p41, %p42
      %p45 = scmp.ne.s32.totalorder %s28, %s44
      %p46 = scmp.eq.s32.totalorder %s20, 0
      %p47 = por %p45, %p46
      %s49 = sadd.s32 %s48, 1
      %p52 = scmp.eq.s32.totalorder %s14, 3
      %p53 = scmp.ne.s32.totalorder %s48, %s50
      %p54 = scmp.eq.s32.totalorder %s14, 0
      %p55 = por %p53, %p54
      %p56 = scmp.ne.s32.totalorder %s48, %s50
      %p57 = scmp.eq.s32.totalorder %s19, 3
      %p58 = por %p56, %p57
      %p59 = scmp.ne.s32.totalorder %s50, %s51
      %p60 = scmp.eq.s32.totalorder %s19, 0
      %p61 = por %p59, %p60
      %p62 = scmp.ne.s32.totalorder %s50, %s51
      %p63 = scmp.eq.s32.totalorder %s20, 3
      %p64 = por %p62, %p63
      %p66 = scmp.ne.s32.totalorder %s51, %s65
      %p67 = scmp.eq.s32.totalorder %s20, 0
      %p68 = por %p66, %p67
      %s70 = sadd.s32 %s69, 1
      %p73 = scmp.eq.s32.totalorder %s14, 3
      %p74 = scmp.ne.s32.totalorder %s69, %s71
      %p75 = scmp.eq.s32.totalorder %s14, 0
      %p76 = por %p74, %p75
      %p77 = scmp.ne.s32.totalorder %s69, %s71
      %p78 = scmp.eq.s32.totalorder %s19, 3
      %p79 = por %p77, %p78
      %p80 = scmp.ne.s32.totalorder %s71, %s72
      %p81 = scmp.eq.s32.totalorder %s19, 0
      %p82 = por %p80, %p81
      %p83 = scmp.ne.s32.totalorder %s71, %s72
      %p84 = scmp.eq.s32.totalorder %s20, 3
      %p85 = por %p83, %p84
      %p87 = scmp.ne.s32.totalorder %s72, %s86
      %p88 = scmp.eq.s32.totalorder %s20, 0
      %p89 = por %p87, %p88
      %s91 = sadd.s32 %s90, 1
      %p94 = scmp.eq.s32.totalorder %s14, 3
      %p95 = scmp.ne.s32.totalorder %s90, %s92
      %p96 = scmp.eq.s32.totalorder %s14, 0
      %p97 = por %p95, %p96
      %p98 = scmp.ne.s32.totalorder %s90, %s92
      %p99 = scmp.eq.s32.totalorder %s19, 3
      %p100 = por %p98, %p99
      %p101 = scmp.ne.s32.totalorder %s92, %s93
      %p102 = scmp.eq.s32.totalorder %s19, 0
      %p103 = por %p101, %p102
      %p104 = scmp.ne.s32.totalorder %s92, %s93
      %p105 = scmp.eq.s32.totalorder %s20, 3
      %p106 = por %p104, %p105
      %p108 = scmp.ne.s32.totalorder %s93, %s107
      %p109 = scmp.eq.s32.totalorder %s20, 0
      %p110 = por %p108, %p109
      %s111 = ssub.s32 %s14, %s21
      %p112 = scmp.eq.s32.totalorder %s111, 0
      %s114 = sadd.s32 %s113, 1
      %s115 = scalar_select %p112, %s113, %s114
      %p118 = pneg %p112
      %p119 = scmp.eq.s32.totalorder %s14, 3
      %p120 = por %p118, %p119
      %p121 = scmp.ne.s32.totalorder %s113, %s116
      %p122 = scmp.eq.s32.totalorder %s14, 0
      %p123 = por %p121, %p122
      %p124 = scmp.ne.s32.totalorder %s113, %s116
      %p125 = scmp.eq.s32.totalorder %s19, 3
      %p126 = por %p124, %p125
      %p127 = scmp.ne.s32.totalorder %s116, %s117
      %p128 = scmp.eq.s32.totalorder %s19, 0
      %p129 = por %p127, %p128
      %p130 = scmp.ne.s32.totalorder %s116, %s117
      %p131 = scmp.eq.s32.totalorder %s20, 3
      %p132 = por %p130, %p131
      %p134 = scmp.ne.s32.totalorder %s117, %s133
      %p135 = scmp.eq.s32.totalorder %s20, 0
      %p136 = por %p134, %p135
      %p137 = scmp.le.s32.totalorder 1, %s14
      %p138 = scmp.lt.s32.totalorder %s14, 5
      %p139 = pnand %p137, %p138
      %p140 = pneg %p139
      // Predicated region
      $region9: #{tpu_custom_call.1} parent=5 // pred_check
        _
      $region10: #{tpu_custom_call.1} parent=5 // pred_check_branch
        %142 = sbr.rel (%p139) target = $region12
      $region11: #{tpu_custom_call.1} parent=5 // pred_region
        %s143 = ssub.s32 %s14, 1
        // Predicated region
        $region13: #{tpu_custom_call.1} parent=11 // pred_check
          %p144 = pneg %p61
        $region14: #{tpu_custom_call.1} parent=11 // pred_check_branch
          %146 = sbr.rel (%p144) target = $region16
        $region15: #{tpu_custom_call.1} parent=11 // pred_region
          %148 = vsyncadd [#allocation5], 0
          %s149 = sshll.u32 %s1, 4
          %s150 = int_to_ptr.hbm [resolvable:$true] %s149
          %s151 = sshll.u32 [#allocation4], 4
          %s152 = int_to_ptr.vmem [resolvable:$true] %s151
          %157 = dma.hbm_to_vmem [thread:$0]  %s150, 512, %s152, [#allocation5], 128, 128, 8
        $region16: #{tpu_custom_call.1} parent=11 // pred_fallthru
          _
        // Predicated region
        $region17: #{tpu_custom_call.1} parent=11 // pred_check
          %p158 = pneg %p82
        $region18: #{tpu_custom_call.1} parent=11 // pred_check_branch
          %160 = sbr.rel (%p158) target = $region20
        $region19: #{tpu_custom_call.1} parent=11 // pred_region
          %162 = vsyncadd [#allocation5], 0
          %s163 = sshll.u32 %s2, 4
          %s164 = int_to_ptr.hbm [resolvable:$true] %s163
          %s165 = sshll.u32 [#allocation6], 4
          %s166 = int_to_ptr.vmem [resolvable:$true] %s165
          %171 = dma.hbm_to_vmem [thread:$0]  %s164, 512, %s166, [#allocation5], 128, 128, 8
        $region20: #{tpu_custom_call.1} parent=11 // pred_fallthru
          _
        // Predicated region
        $region21: #{tpu_custom_call.1} parent=11 // pred_check
          %p172 = pneg %p103
        $region22: #{tpu_custom_call.1} parent=11 // pred_check_branch
          %174 = sbr.rel (%p172) target = $region24
        $region23: #{tpu_custom_call.1} parent=11 // pred_region
          _
        $region24: #{tpu_custom_call.1} parent=11 // pred_fallthru
          _
      $region12: #{tpu_custom_call.1} parent=5 // pred_fallthru
        _
      %p175 = scmp.lt.s32.totalorder %s14, 4
      // Predicated region
      $region25: #{tpu_custom_call.1} parent=5 // pred_check
        %p176 = pneg %p175
      $region26: #{tpu_custom_call.1} parent=5 // pred_check_branch
        %178 = sbr.rel (%p176) target = $region28
      $region27: #{tpu_custom_call.1} parent=5 // pred_region
        // Predicated region
        $region29: #{tpu_custom_call.1} parent=27 // pred_check
          %p179 = pneg %p34
        $region30: #{tpu_custom_call.1} parent=27 // pred_check_branch
          %181 = sbr.rel (%p179) target = $region32
        $region31: #{tpu_custom_call.1} parent=27 // pred_region
          %s182 = sand.u32 %s24, 1
          %s183 = scalar_lea.sflag [#allocation3], %s182
          %s184 = sand.u32 %s24, 1
          %s185 = smul.addr %s184, 64
          %s186 = scalar_lea.vmem [#allocation2], %s185
          %s187 = smul.u32 4, %s14
          %189 = vsyncadd %s183, 0
          %s190 = smul.addr %s187, 2
          %s191 = smul.addr %s190, 8
          %s192 = scalar_lea.hbm %s0, %s191
          %s193 = sshll.u32 %s192, 4
          %s194 = int_to_ptr.hbm [resolvable:$true] %s193
          %s195 = sshll.u32 %s186, 4
          %s196 = int_to_ptr.vmem [resolvable:$true] %s195
          %201 = dma.hbm_to_vmem [thread:$0]  %s194, 1024, %s196, %s183, 128, 128, 8
        $region32: #{tpu_custom_call.1} parent=27 // pred_fallthru
          _
      $region28: #{tpu_custom_call.1} parent=5 // pred_fallthru
        _
      %p202 = scmp.le.s32.totalorder 1, %s14
      %p203 = scmp.lt.s32.totalorder %s14, 5
      %p204 = pnand %p202, %p203
      %p205 = pneg %p204
      // Predicated region
      $region33: #{tpu_custom_call.1} parent=5 // pred_check
        _
      $region34: #{tpu_custom_call.1} parent=5 // pred_check_branch
        %207 = sbr.rel (%p204) target = $region36
      $region35: #{tpu_custom_call.1} parent=5 // pred_region
        %s208 = ssub.s32 %s14, 1
        %s209 = sand.u32 %s27, 1
        %s210 = scalar_lea.sflag [#allocation3], %s209
        %s211 = sand.u32 %s27, 1
        %s212 = smul.addr %s211, 64
        %s213 = scalar_lea.vmem [#allocation2], %s212
        // Predicated region
        $region37: #{tpu_custom_call.1} parent=35 // pred_check
          %p214 = pneg %p40
        $region38: #{tpu_custom_call.1} parent=35 // pred_check_branch
          %216 = sbr.rel (%p214) target = $region40
        $region39: #{tpu_custom_call.1} parent=35 // pred_region
          %218 = dma.done %s210, 1024
        $region40: #{tpu_custom_call.1} parent=35 // pred_fallthru
          _
        // Predicated region
        $region41: #{tpu_custom_call.1} parent=35 // pred_check
          %p219 = pneg %p61
        $region42: #{tpu_custom_call.1} parent=35 // pred_check_branch
          %221 = sbr.rel (%p219) target = $region44
        $region43: #{tpu_custom_call.1} parent=35 // pred_region
          %223 = dma.done [#allocation5], 512
        $region44: #{tpu_custom_call.1} parent=35 // pred_fallthru
          _
        // Predicated region
        $region45: #{tpu_custom_call.1} parent=35 // pred_check
          %p224 = pneg %p82
        $region46: #{tpu_custom_call.1} parent=35 // pred_check_branch
          %226 = sbr.rel (%p224) target = $region48
        $region47: #{tpu_custom_call.1} parent=35 // pred_region
          %228 = dma.done [#allocation5], 512
        $region48: #{tpu_custom_call.1} parent=35 // pred_fallthru
          _
        %s229 = sand.u32 %s27, 1
        %s230 = scalar_lea.sflag [#allocation3], %s229
        %s231 = sand.u32 %s27, 1
        %s232 = smul.addr %s231, 64
        %s233 = scalar_lea.vmem [#allocation2], %s232
        %p234 = pneg %p40
        %p235 = pneg %p37
        %p236 = pneg %p61
        %p237 = pneg %p58
        %p238 = pneg %p82
        %p239 = pneg %p79
        %p240 = pneg %p103
        %p241 = pneg %p100
        %p242 = pneg %p129
        %p243 = pneg %p126
        %s244 = smul.u32 4, %s19
        %p245 = scmp.lt.s32.totalorder %s244, 15
        %s246 = scalar_select %p245, %s244, 15
        %s247 = smul.addr %s246, 8
        %s248 = scalar_lea.vmem %s4, %s247
        %s249 = smul.u32 4, %s19
        %s250 = smul.u32 4, %s19
        %p251 = scmp.lt.s32.totalorder %s250, 15
        %s252 = scalar_select %p251, %s250, 15
        %s253 = smul.addr %s252, 8
        %s254 = scalar_lea.vmem %s4, %s253
        %s255 = smul.u32 4, %s19
        %v256 = vld [vmem:[%s213] sm:$0xff]
        %v257 = vld [vmem:[%s213 + $0x10] sm:$0xff]
        %v258 = vld [vmem:[%s213 + $0x20] sm:$0xff]
        %v259 = vld [vmem:[%s213 + $0x30] sm:$0xff]
        %s260 = scalar_lea.vmem %s213, 8 [#allocation2]
        %v261 = vld [vmem:[%s260] sm:$0xff]
        %v262 = vld [vmem:[%s260 + $0x10] sm:$0xff]
        %v263 = vld [vmem:[%s260 + $0x20] sm:$0xff]
        %v264 = vld [vmem:[%s260 + $0x30] sm:$0xff]
        %vm265 = vcmask 261120
        %v266 = vsel %vm265, %v256, 0.0
        %267 = vadd.xlane.f32.xlu0 %v266
        %v268 = vpop.xlane.xlu0 %267
        %v269 = vsel %vm265, %v257, 0.0
        %270 = vadd.xlane.f32.xlu0 %v269
        %v271 = vpop.xlane.xlu0 %270
        %v272 = vsel %vm265, %v258, 0.0
        %273 = vadd.xlane.f32.xlu0 %v272
        %v274 = vpop.xlane.xlu0 %273
        %v275 = vsel %vm265, %v259, 0.0
        %276 = vadd.xlane.f32.xlu0 %v275
        %v277 = vpop.xlane.xlu0 %276
        %v278 = vsel %vm265, %v261, 0.0
        %279 = vadd.xlane.f32.xlu0 %v278
        %v280 = vpop.xlane.xlu0 %279
        %v281 = vsel %vm265, %v262, 0.0
        %282 = vadd.xlane.f32.xlu0 %v281
        %v283 = vpop.xlane.xlu0 %282
        %v284 = vsel %vm265, %v263, 0.0
        %285 = vadd.xlane.f32.xlu0 %v284
        %v286 = vpop.xlane.xlu0 %285
        %v287 = vsel %vm265, %v264, 0.0
        %288 = vadd.xlane.f32.xlu0 %v287
        %v289 = vpop.xlane.xlu0 %288
        %v290 = vadd.f32 %v268, %v280
        %v291 = vadd.f32 %v271, %v283
        %v292 = vadd.f32 %v274, %v286
        %v293 = vadd.f32 %v277, %v289
        %v294 = vmul.f32 %v290, 0.015625
        %v295 = vmul.f32 %v291, 0.015625
        %v296 = vmul.f32 %v292, 0.015625
        %v297 = vmul.f32 %v293, 0.015625
        %v298 = vmul.f32 %v256, %v256
        %v299 = vmul.f32 %v257, %v257
        %v300 = vmul.f32 %v258, %v258
        %v301 = vmul.f32 %v259, %v259
        %v302 = vsel %vm265, %v298, 0.0
        %303 = vadd.xlane.f32.xlu0 %v302
        %v304 = vpop.xlane.xlu0 %303
        %v305 = vsel %vm265, %v299, 0.0
        %306 = vadd.xlane.f32.xlu0 %v305
        %v307 = vpop.xlane.xlu0 %306
        %v308 = vsel %vm265, %v300, 0.0
        %309 = vadd.xlane.f32.xlu0 %v308
        %v310 = vpop.xlane.xlu0 %309
        %v311 = vsel %vm265, %v301, 0.0
        %312 = vadd.xlane.f32.xlu0 %v311
        %v313 = vpop.xlane.xlu0 %312
        %v314 = vmul.f32 %v261, %v261
        %v315 = vmul.f32 %v262, %v262
        %v316 = vmul.f32 %v263, %v263
        %v317 = vmul.f32 %v264, %v264
        %v318 = vsel %vm265, %v314, 0.0
        %319 = vadd.xlane.f32.xlu0 %v318
        %v320 = vpop.xlane.xlu0 %319
        %v321 = vsel %vm265, %v315, 0.0
        %322 = vadd.xlane.f32.xlu0 %v321
        %v323 = vpop.xlane.xlu0 %322
        %v324 = vsel %vm265, %v316, 0.0
        %325 = vadd.xlane.f32.xlu0 %v324
        %v326 = vpop.xlane.xlu0 %325
        %v327 = vsel %vm265, %v317, 0.0
        %328 = vadd.xlane.f32.xlu0 %v327
        %v329 = vpop.xlane.xlu0 %328
        %v330 = vadd.f32 %v304, %v320
        %v331 = vadd.f32 %v307, %v323
        %v332 = vadd.f32 %v310, %v326
        %v333 = vadd.f32 %v313, %v329
        %v334 = vmul.f32 %v330, 0.015625
        %v335 = vmul.f32 %v331, 0.015625
        %v336 = vmul.f32 %v332, 0.015625
        %v337 = vmul.f32 %v333, 0.015625
        %v338 = vmul.f32 %v294, %v294
        %v339 = vmul.f32 %v295, %v295
        %v340 = vmul.f32 %v296, %v296
        %v341 = vmul.f32 %v297, %v297
        %v342 = vsub.f32 %v334, %v338
        %v343 = vsub.f32 %v335, %v339
        %v344 = vsub.f32 %v336, %v340
        %v345 = vsub.f32 %v337, %v341
        %v346 = vmax.f32 %v342, 0.0
        %v347 = vmax.f32 %v343, 0.0
        %v348 = vmax.f32 %v344, 0.0
        %v349 = vmax.f32 %v345, 0.0
        %v350 = vadd.f32 %v346, 1e-05
        %v351 = vadd.f32 %v347, 1e-05
        %v352 = vadd.f32 %v348, 1e-05
        %v353 = vadd.f32 %v349, 1e-05
        %v354 = vrsqrt.pop %v350
        %v355 = vmul.f32 %v354, %v350
        %v356 = vmul.f32 %v355, %v354
        %v357 = vmul.f32 0.5, %v356
        %v358 = vsub.f32 1.5, %v357
        %v359 = vmul.f32 %v354, %v358
        %vm360 = vweird.f32 %v350
        %vm361 = vweird.f32 %v354
        %vm362 = vmor %vm360, %vm361
        %v363 = vsel %vm362, %v354, %v359
        %v364 = vrsqrt.pop %v351
        %v365 = vmul.f32 %v364, %v351
        %v366 = vmul.f32 %v365, %v364
        %v367 = vmul.f32 0.5, %v366
        %v368 = vsub.f32 1.5, %v367
        %v369 = vmul.f32 %v364, %v368
        %vm370 = vweird.f32 %v351
        %vm371 = vweird.f32 %v364
        %vm372 = vmor %vm370, %vm371
        %v373 = vsel %vm372, %v364, %v369
        %v374 = vrsqrt.pop %v352
        %v375 = vmul.f32 %v374, %v352
        %v376 = vmul.f32 %v375, %v374
        %v377 = vmul.f32 0.5, %v376
        %v378 = vsub.f32 1.5, %v377
        %v379 = vmul.f32 %v374, %v378
        %vm380 = vweird.f32 %v352
        %vm381 = vweird.f32 %v374
        %vm382 = vmor %vm380, %vm381
        %v383 = vsel %vm382, %v374, %v379
        %v384 = vrsqrt.pop %v353
        %v385 = vmul.f32 %v384, %v353
        %v386 = vmul.f32 %v385, %v384
        %v387 = vmul.f32 0.5, %v386
        %v388 = vsub.f32 1.5, %v387
        %v389 = vmul.f32 %v384, %v388
        %vm390 = vweird.f32 %v353
        %vm391 = vweird.f32 %v384
        %vm392 = vmor %vm390, %vm391
        %v393 = vsel %vm392, %v384, %v389
        %v394 = vsub.f32 %v256, %v294
        %v395 = vsub.f32 %v257, %v295
        %v396 = vsub.f32 %v258, %v296
        %v397 = vsub.f32 %v259, %v297
        %v398 = vmul.f32 %v394, %v363
        %v399 = vmul.f32 %v395, %v373
        %v400 = vmul.f32 %v396, %v383
        %v401 = vmul.f32 %v397, %v393
        %v402 = vsub.f32 %v261, %v294
        %v403 = vsub.f32 %v262, %v295
        %v404 = vsub.f32 %v263, %v296
        %v405 = vsub.f32 %v264, %v297
        %v406 = vmul.f32 %v402, %v363
        %v407 = vmul.f32 %v403, %v373
        %v408 = vmul.f32 %v404, %v383
        %v409 = vmul.f32 %v405, %v393
        %v410 = vld [vmem:[#allocation4] sm:$0xff]
        %v411 = vld [vmem:[#allocation4 + $0x8] sm:$0xff]
        %v412 = vld [vmem:[#allocation4 + $0x10] sm:$0xff]
        %v413 = vld [vmem:[#allocation4 + $0x18] sm:$0xff]
        %v414 = vld [vmem:[#allocation6] sm:$0xff]
        %v415 = vld [vmem:[#allocation6 + $0x8] sm:$0xff]
        %v416 = vld [vmem:[#allocation6 + $0x10] sm:$0xff]
        %v417 = vld [vmem:[#allocation6 + $0x18] sm:$0xff]
        %v419 = vsel %vm265, %v406, 0
        %v422 = vsel %vm265, %v407, 0
        %v425 = vsel %vm265, %v408, 0
        %v428 = vsel %vm265, %v409, 0
        %430 = vmatpush.msra.mxu0 0.0
        %431 = vmatpush.msra.mxu0 0.0
        %432 = vmatpush.msra.mxu0 0.0
        %433 = vmatpush.msra.mxu0 0.0
        %434 = vmatpush.msra.mxu0 0.0
        %435 = vmatpush.msra.mxu0 0.0
        %436 = vmatpush.msra.mxu0 0.0
        %437 = vmatpush.msra.mxu0 0.0
        %438 = vmatpush.msra.mxu0 0.0
        %439 = vmatpush.msra.mxu0 0.0
        %440 = vmatpush.msra.mxu0 0.0
        %441 = vmatpush.msra.mxu0 0.0
        %442 = vmatpush.msra.mxu0 %v417
        %443 = vmatpush.msra.mxu0 %v416
        %444 = vmatpush.msra.mxu0 %v415
        %445 = vmatpush.msra.mxu0 %v414
        %446 = vmatmul.f32.gmra.mxu0 %v419
        %v447 = vpop.f32.mrf.mxu0
        %v448 = vadd.f32 0.0, %v447
        %449 = vmatmul.f32.gmra.mxu0 %v422
        %v450 = vpop.f32.mrf.mxu0
        %v451 = vadd.f32 0.0, %v450
        %452 = vmatmul.f32.gmra.mxu0 %v425
        %v453 = vpop.f32.mrf.mxu0
        %v454 = vadd.f32 0.0, %v453
        %455 = vmatmul.f32.gmra.mxu0 %v428
        %v456 = vpop.f32.mrf.mxu0
        %v457 = vadd.f32 0.0, %v456
        %458 = vdwg.mxu0
        %v460 = vsel %vm265, %v398, 0
        %v463 = vsel %vm265, %v399, 0
        %v466 = vsel %vm265, %v400, 0
        %v469 = vsel %vm265, %v401, 0
        %471 = vmatpush.msra.mxu0 0.0
        %472 = vmatpush.msra.mxu0 0.0
        %473 = vmatpush.msra.mxu0 0.0
        %474 = vmatpush.msra.mxu0 0.0
        %475 = vmatpush.msra.mxu0 0.0
        %476 = vmatpush.msra.mxu0 0.0
        %477 = vmatpush.msra.mxu0 0.0
        %478 = vmatpush.msra.mxu0 0.0
        %479 = vmatpush.msra.mxu0 0.0
        %480 = vmatpush.msra.mxu0 0.0
        %481 = vmatpush.msra.mxu0 0.0
        %482 = vmatpush.msra.mxu0 0.0
        %483 = vmatpush.msra.mxu0 %v413
        %484 = vmatpush.msra.mxu0 %v412
        %485 = vmatpush.msra.mxu0 %v411
        %486 = vmatpush.msra.mxu0 %v410
        %487 = vmatmul.f32.gmra.mxu0 %v460
        %v488 = vpop.f32.mrf.mxu0
        %v489 = vadd.f32 %v448, %v488
        %490 = vmatmul.f32.gmra.mxu0 %v463
        %v491 = vpop.f32.mrf.mxu0
        %v492 = vadd.f32 %v451, %v491
        %493 = vmatmul.f32.gmra.mxu0 %v466
        %v494 = vpop.f32.mrf.mxu0
        %v495 = vadd.f32 %v454, %v494
        %496 = vmatmul.f32.gmra.mxu0 %v469
        %v497 = vpop.f32.mrf.mxu0
        %v498 = vadd.f32 %v457, %v497
        %499 = vdwg.mxu0
        %v500 = vld [vmem:[%s3] sm:$0x1]
        %v502 = vperm.slane %v500, 0
        %v504 = vadd.f32 %v489, %v502
        %v505 = vadd.f32 %v492, %v502
        %v506 = vadd.f32 %v495, %v502
        %v507 = vadd.f32 %v498, %v502
        %508 = vst.msk [vmem:[%s254] sm:$0xff] %vm265, %v504
        %509 = vst.msk [vmem:[%s254 + $0x8] sm:$0xff] %vm265, %v505
        %510 = vst.msk [vmem:[%s254 + $0x10] sm:$0xff] %vm265, %v506
        %511 = vst.msk [vmem:[%s254 + $0x18] sm:$0xff] %vm265, %v507
        %s512 = smul.u32 4, %s19
        %p513 = scmp.lt.s32.totalorder %s512, 15
        %s514 = scalar_select %p513, %s512, 15
        %s515 = smul.addr %s514, 8
        %s516 = scalar_lea.vmem %s4, %s515
        // Predicated region
        $region49: #{tpu_custom_call.1} parent=35 // pred_check
          %p517 = pneg %p126
        $region50: #{tpu_custom_call.1} parent=35 // pred_check_branch
          %519 = sbr.rel (%p517) target = $region52
        $region51: #{tpu_custom_call.1} parent=35 // pred_region
          %s520 = smul.u32 4, %s19
        $region52: #{tpu_custom_call.1} parent=35 // pred_fallthru
          _
      $region36: #{tpu_custom_call.1} parent=5 // pred_fallthru
        _
      %p521 = scmp.le.s32.totalorder 2, %s14
      // Predicated region
      $region53: #{tpu_custom_call.1} parent=5 // pred_check
        %p522 = pneg %p521
      $region54: #{tpu_custom_call.1} parent=5 // pred_check_branch
        %524 = sbr.rel (%p522) target = $region56
      $region55: #{tpu_custom_call.1} parent=5 // pred_region
        %s525 = ssub.s32 %s14, 2
        // Predicated region
        $region57: #{tpu_custom_call.1} parent=55 // pred_check
          %p526 = pneg %p132
        $region58: #{tpu_custom_call.1} parent=55 // pred_check_branch
          %528 = sbr.rel (%p526) target = $region60
        $region59: #{tpu_custom_call.1} parent=55 // pred_region
          %s529 = smul.u32 4, %s20
          %p530 = scmp.lt.s32.totalorder %s529, 15
          %s531 = scalar_select %p530, %s529, 15
          %s532 = smul.addr %s531, 8
          %s533 = scalar_lea.vmem %s4, %s532
        $region60: #{tpu_custom_call.1} parent=55 // pred_fallthru
          _
      $region56: #{tpu_custom_call.1} parent=5 // pred_fallthru
        _
    $region6: #{tpu_custom_call.1} parent=1 // loop_footer
      %s18 = sadd.s32 1, %s14
    $region7: #{tpu_custom_call.1} parent=1 // loop_footer_branch
      %13 = sbr.rel target = $region3
    $region8: #{tpu_custom_call.1} parent=1 // loop_exit
      _
    %534 = vsyncpa [#allocation3], 1
    %s535 = scalar_lea.sflag [#allocation3], 1
    %536 = vsyncpa %s535, 1
    %537 = vsyncpa [#allocation5], 1

</llo_original>
